<compile_context>
chip_gen: v6e
topology: v6e:2x2x1
jax: 0.10.0
libtpu: 0.0.40
codegen_flags: <defaults>
</compile_context>

<pallas_src>
import jax
import jax.numpy as jnp
from jax.experimental import pallas as pl
from jax.experimental.pallas import tpu as pltpu

_LANE = 128      # lane width
_TR_CAP = 512    # max row-tile (rows of 128 lanes) per grid step; 3*512*128*4B = 768 KiB/block


def _global_max_kernel(x_ref, max_ref):
    # x_ref:  (C, TR, 128) VMEM tile
    # max_ref: (1,) SMEM scalar output, resident across the ("arbitrary") grid axis.
    tile_max = jnp.max(x_ref[...])

    @pl.when(pl.program_id(0) == 0)
    def _():
        max_ref[0] = tile_max

    @pl.when(pl.program_id(0) > 0)
    def _():
        max_ref[0] = jnp.maximum(max_ref[0], tile_max)


def _normalize_kernel(x_ref, max_ref, scale_ref, offset_ref, o_ref):
    # x_ref/o_ref: (C, TR, 128) VMEM tiles
    # max_ref:    (1,) SMEM   -- global max from pass 1
    # scale_ref:  (C,) SMEM   -- 1/std per channel
    # offset_ref: (C,) SMEM   -- mean/std per channel
    inv_m = 1.0 / max_ref[0]                 # one exact scalar reciprocal per step
    c = x_ref.shape[0]
    for ci in range(c):                      # static unroll over the 3 channels
        s = inv_m * scale_ref[ci]            # scalar path: fold max into channel scale
        b = offset_ref[ci]
        o_ref[ci] = x_ref[ci] * s - b        # one vector mul + one vector sub per element


def standardization(x, mean, std):
    """x: (1, C, H, W) float32 -> (1, C, H, W) float32."""
    n, c, h, w = x.shape
    assert n == 1, "Standardization assumes a (1, C, H, W) tensor"
    hw = h * w

    # Row-tiling: pad HW so it maps onto (R_pad, 128) with R_pad = num_tiles * TR,
    # TR a multiple of 8 (full sublane packing) capped at _TR_CAP rows.
    r = -(-hw // _LANE)                       # ceil(hw / 128)
    num_tiles = -(-r // _TR_CAP)              # grid size
    tr = -(-r // num_tiles)                   # rows per tile
    tr = -(-tr // 8) * 8                      # round up to a multiple of 8
    r_pad = num_tiles * tr
    hw_pad = r_pad * _LANE

    x2d = x.reshape(c, hw).astype(jnp.float32)
    if hw_pad > hw:
        # -inf padding keeps the global max exact even for all-negative inputs.
        x2d = jnp.pad(x2d, ((0, 0), (0, hw_pad - hw)),
                      constant_values=-jnp.inf)
    x3d = x2d.reshape(c, r_pad, _LANE)

    inv_std = (1.0 / std.astype(jnp.float32)).reshape(c)          # (C,) SMEM scalars
    offset = (mean.astype(jnp.float32) * inv_std).reshape(c)      # (C,) SMEM scalars

    block = (c, tr, _LANE)
    tile_map = lambda i: (0, i, 0)

    # Pass 1: global max (sequential reduction over row tiles, scalar in SMEM).
    max_val = pl.pallas_call(
        _global_max_kernel,
        out_shape=jax.ShapeDtypeStruct((1,), jnp.float32),
        grid=(num_tiles,),
        in_specs=[pl.BlockSpec(block, tile_map)],
        out_specs=pl.BlockSpec(memory_space=pltpu.MemorySpace.SMEM),
        compiler_params=pltpu.CompilerParams(
            dimension_semantics=("arbitrary",)),
    )(x3d)

    # Pass 2: normalize (independent row tiles -> "parallel" for megacore/v7x).
    out3d = pl.pallas_call(
        _normalize_kernel,
        out_shape=jax.ShapeDtypeStruct((c, r_pad, _LANE), jnp.float32),
        grid=(num_tiles,),
        in_specs=[
            pl.BlockSpec(block, tile_map),
            pl.BlockSpec(memory_space=pltpu.MemorySpace.SMEM),   # max
            pl.BlockSpec(memory_space=pltpu.MemorySpace.SMEM),   # 1/std
            pl.BlockSpec(memory_space=pltpu.MemorySpace.SMEM),   # mean/std
        ],
        out_specs=pl.BlockSpec(block, tile_map),
        compiler_params=pltpu.CompilerParams(
            dimension_semantics=("parallel",)),
    )(x3d, max_val, inv_std, offset)

    out2d = out3d.reshape(c, hw_pad)[:, :hw]
    return out2d.reshape(1, c, h, w)


if __name__ == "__main__":
    key = jax.random.PRNGKey(0)
    # Module assumes (1, 3, H, W); use a small spatial size.
    x = jax.random.uniform(key, (1, 3, 16, 16), dtype=jnp.float32)

    mean = jnp.array([0.485, 0.456, 0.406], dtype=jnp.float32)
    std = jnp.array([0.229, 0.224, 0.225], dtype=jnp.float32)

    out = standardization(x, mean, std)
    jax.block_until_ready(out)

    # Reference in plain JAX (same semantics as the PyTorch forward).
    y = x / jnp.max(x)
    ref = (y[0] - mean[:, None, None]) / std[:, None, None]
    ref = ref[None]
    assert out.shape == (1, 3, 16, 16)
    assert jnp.allclose(out, ref, atol=1e-5, rtol=1e-5)

    print("KERNEL_OK")
</pallas_src>

<mosaic_0001>
module attributes {stable_mosaic.version = 11 : i64} {
  func.func @_global_max_kernel(%arg0: i32, %arg1: memref<3x8x128xf32, #tpu.memory_space<vmem>>, %arg2: memref<1xf32, #tpu.memory_space<smem>>) attributes {dimension_semantics = [#tpu.dimension_semantics<arbitrary>], iteration_bounds = array<i64: 1>, scalar_prefetch = 0 : i64, scratch_operands = 0 : i64, tpu.core_type = #tpu.core_type<tc>, window_params = [{transform_indices = @transform_0, window_bounds = array<i64: 3, 8, 128>}, {transform_indices = @transform_1, window_bounds = array<i64: 1>}]} {
    %c0 = arith.constant 0 : index
    %c0_0 = arith.constant 0 : index
    %c0_1 = arith.constant 0 : index
    %0 = vector.load %arg1[%c0, %c0_0, %c0_1] : memref<3x8x128xf32, #tpu.memory_space<vmem>>, vector<3x8x128xf32>
    %1 = vector.shape_cast %0 : vector<3x8x128xf32> to vector<1x3x8x128xf32>
    %cst = arith.constant dense<0xFF800000> : vector<1xf32>
    %2 = vector.multi_reduction <maximumf>, %1, %cst [1, 2, 3] : vector<1x3x8x128xf32> to vector<1xf32>
    %3 = vector.shape_cast %2 : vector<1xf32> to vector<1x1x1x1xf32>
    %4 = vector.extract %3[0, 0, 0, 0] : f32 from vector<1x1x1x1xf32>
    %c0_i32 = arith.constant 0 : i32
    %5 = arith.cmpi eq, %arg0, %c0_i32 : i32
    %6 = arith.extui %5 : i1 to i32
    %c0_i32_2 = arith.constant 0 : i32
    %7 = arith.cmpi ne, %6, %c0_i32_2 : i32
    scf.if %7 {
      %c0_5 = arith.constant 0 : index
      %11 = memref.load %arg2[%c0_5] : memref<1xf32, #tpu.memory_space<smem>>
      memref.store %4, %arg2[%c0_5] : memref<1xf32, #tpu.memory_space<smem>>
    } else {
    }
    %c0_i32_3 = arith.constant 0 : i32
    %8 = arith.cmpi sgt, %arg0, %c0_i32_3 : i32
    %9 = arith.extui %8 : i1 to i32
    %c0_i32_4 = arith.constant 0 : i32
    %10 = arith.cmpi ne, %9, %c0_i32_4 : i32
    scf.if %10 {
      %c0_5 = arith.constant 0 : index
      %11 = memref.load %arg2[%c0_5] : memref<1xf32, #tpu.memory_space<smem>>
      %12 = arith.maximumf %11, %4 : f32
      %c0_6 = arith.constant 0 : index
      %13 = memref.load %arg2[%c0_6] : memref<1xf32, #tpu.memory_space<smem>>
      memref.store %12, %arg2[%c0_6] : memref<1xf32, #tpu.memory_space<smem>>
    } else {
    }
    return
  }
  func.func @transform_0(%arg0: i32) -> (i32, i32, i32) {
    %c0_i32 = arith.constant 0 : i32
    %c0_i32_0 = arith.constant 0 : i32
    %c0_i32_1 = arith.constant 0 : i32
    return %c0_i32, %arg0, %c0_i32_0 : i32, i32, i32
  }
  func.func @transform_1(%arg0: i32) -> i32 {
    %c0_i32 = arith.constant 0 : i32
    %c0_i32_0 = arith.constant 0 : i32
    return %c0_i32 : i32
  }
}

</mosaic_0001>

<llo_original>
// kernel: tpu_custom_call.1
$region0: #{tpu_custom_call.1}
  #allocation0 [shape = 'u32[]', space=smem, size = 0x4, offset = 0x4, fixed_abs, tag = 'smem constant byte address 0x4 - core index']
  #allocation1 [shape = 'u32[144,128]{1,0:T(1,128)}', space=vmem, size = 0x12000, scoped, tag = 'internal scratch']
  %s0 = inlined_call_operand.hbm [shape: f32[3,8,128], index: 0, kind: input, shape index: {}]
  %s1 = inlined_call_operand.hbm [shape: f32[1], index: 1, kind: output, shape index: {}]
  %s2 = sld [smem:[#allocation0]]
  $region26: #{tpu_custom_call.1} parent=0
    _
  %s4 = ssub.s32 1, %s2
  %s5 = scalar_select 0, %s4, %s2
  $region1: #{tpu_custom_call.1} parent=0
    #allocation2 [shape = 'u8[12288]{0}', space=vmem, size = 0x3000, scoped, tag = 'input window, operand 0, single buffered']
    #allocation3 [shape = 's32[1]{0}', space=sflag, size = 0x4, scoped, tag = 'scoped memory for tpu_custom_call.1']
    #allocation4 [shape = 's32[1]{0}', space=sflag, size = 0x4, scoped, tag = 'scoped memory for tpu_custom_call.1']
    #allocation5 [shape = 'u8[512]{0}', space=smem, size = 0x200, scoped, tag = 'output window, operand 0, single buffered']
    %6 = vsyncpa [#allocation3], 0
    %7 = vsyncpa [#allocation4], 0
    // Predicated region
    $region2: #{tpu_custom_call.1} parent=1 // pred_check
      _
    $region3: #{tpu_custom_call.1} parent=1 // pred_check_branch
      %9 = sbr.rel (0) target = $region5
    $region4: #{tpu_custom_call.1} parent=1 // pred_region
      %s11 = ssub.s32 384, 384
      %12 = vsyncadd [#allocation3], %s11
      %s13 = sshll.u32 [#allocation2], 4
      %s14 = int_to_ptr.vmem [resolvable:$true] %s13
      %19 = dma.hbm_to_vmem [thread:$0]  %s0, 384, %s14, [#allocation3], 128, 128, 8
    $region5: #{tpu_custom_call.1} parent=1 // pred_fallthru
      _
    // Predicated region
    $region6: #{tpu_custom_call.1} parent=1 // pred_check
      _
    $region7: #{tpu_custom_call.1} parent=1 // pred_check_branch
      %21 = sbr.rel (0) target = $region9
    $region8: #{tpu_custom_call.1} parent=1 // pred_region
      %22 = dma.done [#allocation3], 384
    $region9: #{tpu_custom_call.1} parent=1 // pred_fallthru
      _
    %v23 = vld [vmem:[#allocation2] sm:$0xff]
    %v24 = vld [vmem:[#allocation2 + $0x8] sm:$0xff]
    %v25 = vld [vmem:[#allocation2 + $0x10] sm:$0xff]
    %v26 = vmax.f32 %v23, %v24
    %v27 = vmax.f32 %v26, %v25
    %28 = vmax.xlane.f32.xlu0 %v27
    %v29 = vpop.xlane.xlu0 %28
    %v30 = vrot.slane %v29, 4
    %v31 = vmax.f32 %v29, %v30
    %v32 = vrot.slane %v31, 2
    %v33 = vmax.f32 %v31, %v32
    %v34 = vrot.slane %v33, 1
    %v35 = vmax.f32 %v33, %v34
    %s36 = vtos %v35
    %p37 = scmp.eq.s32.totalorder 0, 0
    // Predicated region
    $region10: #{tpu_custom_call.1} parent=1 // pred_check
      %p38 = pneg %p37
    $region11: #{tpu_custom_call.1} parent=1 // pred_check_branch
      %40 = sbr.rel (%p38) target = $region13
    $region12: #{tpu_custom_call.1} parent=1 // pred_region
      %s41 = scalar_lea.smem [#allocation5], 0
      %42 = sst [smem:[%s41]] %s36
    $region13: #{tpu_custom_call.1} parent=1 // pred_fallthru
      _
    %p43 = scmp.gt.s32.totalorder 0, 0
    // Predicated region
    $region14: #{tpu_custom_call.1} parent=1 // pred_check
      %p44 = pneg %p43
    $region15: #{tpu_custom_call.1} parent=1 // pred_check_branch
      %46 = sbr.rel (%p44) target = $region17
    $region16: #{tpu_custom_call.1} parent=1 // pred_region
      %s47 = sld [smem:[#allocation5]]
      %s48 = smax.f32 %s47, %s36
      %s49 = scalar_lea.smem [#allocation5], 0
      %50 = sst [smem:[%s49]] %s48
    $region17: #{tpu_custom_call.1} parent=1 // pred_fallthru
      _
    // Predicated region
    $region18: #{tpu_custom_call.1} parent=1 // pred_check
      _
    $region19: #{tpu_custom_call.1} parent=1 // pred_check_branch
      %52 = sbr.rel (0) target = $region21
    $region20: #{tpu_custom_call.1} parent=1 // pred_region
      %s54 = ssub.s32 16, 16
      %55 = vsyncadd [#allocation4], %s54
      %58 = dma.smem_to_hbm [#allocation5], 16, %s1, [#allocation4]
    $region21: #{tpu_custom_call.1} parent=1 // pred_fallthru
      _
    // Predicated region
    $region22: #{tpu_custom_call.1} parent=1 // pred_check
      _
    $region23: #{tpu_custom_call.1} parent=1 // pred_check_branch
      %60 = sbr.rel (0) target = $region25
    $region24: #{tpu_custom_call.1} parent=1 // pred_region
      %61 = dma.done [#allocation4], 16
    $region25: #{tpu_custom_call.1} parent=1 // pred_fallthru
      _
    %62 = sfence
    %63 = vsyncpa [#allocation3], 1
    %64 = vsyncpa [#allocation4], 1

</llo_original>
